<compile_context>
chip_gen: v7x
topology: tpu7x:2x2x1
jax: 0.10.0
libtpu: 0.0.40
codegen_flags: <defaults>
</compile_context>

<pallas_src>
import functools

import jax
import jax.numpy as jnp
from jax.experimental import pallas as pl
from jax.experimental.pallas import tpu as pltpu

ALPHA = 0.005   # default forward arg
LANE = 128


def _head_merging_kernel(x_eeg_ref, x_hyp_ref,
                         w_eeg_ref, b_eeg_ref,
                         w_hyp_ref, b_hyp_ref,
                         w_out_ref, b_out_ref,
                         slab_ref, acc_ref, *, alpha, seq_len):
    """Grid = (batch_tiles, seq_tiles); seq axis is a running-sum reduction."""
    j = pl.program_id(1)
    TB, TS, C = x_eeg_ref.shape
    H = x_hyp_ref.shape[-1]

    @pl.when(j == 0)
    def _init():
        acc_ref[...] = jnp.zeros_like(acc_ref)

    x_eeg = x_eeg_ref[...].astype(jnp.float32)               # (TB, TS, C)
    if seq_len % TS:                                          # mask OOB tail of last seq tile
        pos = j * TS + jax.lax.broadcasted_iota(jnp.int32, (1, TS, 1), 1)
        x_eeg = jnp.where(pos < seq_len, x_eeg, 0.0)
    acc_ref[...] += jnp.sum(x_eeg, axis=1)                    # (TB, C) running sum

    @pl.when(j == pl.num_programs(1) - 1)
    def _finalize():
        # AdaptiveAvgPool1d(1) over the sequence axis.
        pooled_eeg = acc_ref[...] * (1.0 / seq_len)           # (TB, C)
        x_hyp = x_hyp_ref[...].astype(jnp.float32)            # (TB, L_hyp, 10), tiny
        pooled_hyp = jnp.mean(x_hyp, axis=1)                  # (TB, 10)

        # Tiny projections; f32 accumulation. (MXU occupancy is irrelevant here —
        # the kernel is memory-bound on the x_eeg stream.)
        out_eeg = jnp.dot(pooled_eeg, w_eeg_ref[...],
                          preferred_element_type=jnp.float32) + b_eeg_ref[...]
        out_hyp = jnp.dot(pooled_hyp, w_hyp_ref[...],
                          preferred_element_type=jnp.float32) + b_hyp_ref[...]

        # Gating: sigmoid on EUP, single fused VPU multiply-add.
        gate = jax.nn.sigmoid(out_hyp) * alpha
        out_feat = out_eeg * (1.0 + gate)
        output = jnp.dot(out_feat, w_out_ref[...],
                         preferred_element_type=jnp.float32) + b_out_ref[...]   # (TB, 1)

        # Lane-dense packed output slab (HBM writeback is a full unmasked 128-lane DMA).
        slab_ref[...] = jnp.zeros_like(slab_ref)
        slab_ref[:, 0:1] = output
        slab_ref[:, 1:1 + C] = pooled_eeg
        slab_ref[:, 1 + C:1 + C + H] = pooled_hyp


def _pick_tiles(B, L_eeg, C, L_hyp, H, budget_bytes=8 * 1024 * 1024):
    """Tile sizes so double-buffered f32 input tiles stay under ~8 MiB (safe on all chips)."""
    full_row = 2 * 4 * (L_eeg * C + L_hyp * H)     # bytes per batch row, full seq, 2x buffered
    tb = budget_bytes // max(full_row, 1)
    if tb >= B:
        return B, L_eeg                            # single block covers the whole batch
    if tb >= 8:
        return (tb // 8) * 8, L_eeg                # keep (8,128) sublane alignment
    # Even 8 full-seq batch rows exceed the budget -> tile the sequence axis too.
    tb = min(B, 8)
    ts = (budget_bytes // (2 * 4 * tb * C) // 8) * 8
    ts = max(8, min(ts, L_eeg))
    return tb, ts


def head_merging(x_eeg, x_hyp, params, *, alpha=ALPHA):
    B, L_eeg, C = x_eeg.shape
    _, L_hyp, H = x_hyp.shape
    out_chans = params["w_eeg"].shape[1]

    slab_w = pl.cdiv(1 + C + H, LANE) * LANE
    tb, ts = _pick_tiles(B, L_eeg, C, L_hyp, H)
    grid = (pl.cdiv(B, tb), pl.cdiv(L_eeg, ts))

    def full_spec(shape):
        return pl.BlockSpec(shape, lambda i, j, _n=len(shape): (0,) * _n)

    in_specs = [
        pl.BlockSpec((tb, ts, C), lambda i, j: (i, j, 0)),      # streamed, double-buffered
        pl.BlockSpec((tb, L_hyp, H), lambda i, j: (i, 0, 0)),   # tiny, resident per batch tile
        full_spec(params["w_eeg"].shape),
        full_spec(params["b_eeg"].shape),
        full_spec(params["w_hyp"].shape),
        full_spec(params["b_hyp"].shape),
        full_spec(params["w_out"].shape),
        full_spec(params["b_out"].shape),
    ]
    out_spec = pl.BlockSpec((tb, slab_w), lambda i, j: (i, 0))  # resident across seq axis

    flops = int(2 * B * (L_eeg * C + L_hyp * H
                         + C * out_chans + H * out_chans + out_chans)
                + 4 * B * out_chans)
    bytes_accessed = int(4 * (B * L_eeg * C + B * L_hyp * H + B * slab_w
                              + (C + H + out_chans) * out_chans + 3 * out_chans + 1))
    cost = pl.CostEstimate(flops=flops,
                           transcendentals=int(B * out_chans),
                           bytes_accessed=bytes_accessed)

    slab = pl.pallas_call(
        functools.partial(_head_merging_kernel, alpha=alpha, seq_len=L_eeg),
        out_shape=jax.ShapeDtypeStruct((B, slab_w), jnp.float32),
        grid=grid,
        in_specs=in_specs,
        out_specs=out_spec,
        scratch_shapes=[pltpu.VMEM((tb, C), jnp.float32)],      # running-sum accumulator
        compiler_params=pltpu.CompilerParams(
            dimension_semantics=("parallel", "arbitrary"),      # batch across TCs, seq reduce
            vmem_limit_bytes=32 * 1024 * 1024,
        ),
        cost_estimate=cost,
    )(x_eeg, x_hyp,
      params["w_eeg"], params["b_eeg"],
      params["w_hyp"], params["b_hyp"],
      params["w_out"], params["b_out"])

    output = slab[:, 0:1]                 # (B, 1)
    feat = slab[:, 1:1 + C + H]           # (B, C + 10)  == concat([pooled_eeg, pooled_hyp])
    return output, feat


def init_params(key, embed_dim, out_chans):
    # Deterministic synthetic init (no checkpoint load).
    k1, k2, k3, k4, k5 = jax.random.split(key, 5)
    scale = 0.1
    # Stored already transposed: (in_features, out_features).
    w_eeg = scale * jax.random.normal(k1, (embed_dim, out_chans), jnp.float32)
    b_eeg = scale * jax.random.normal(k2, (1, out_chans), jnp.float32)
    w_hyp = scale * jax.random.normal(k3, (10, out_chans), jnp.float32)
    b_hyp = scale * jax.random.normal(k4, (1, out_chans), jnp.float32)
    w_out = scale * jax.random.normal(k5, (out_chans, 1), jnp.float32)
    b_out = jnp.full((1, 1), 50.0, jnp.float32)          # matches fc_out.bias.data = [50.0]
    return dict(w_eeg=w_eeg, b_eeg=b_eeg, w_hyp=w_hyp, b_hyp=b_hyp,
                w_out=w_out, b_out=b_out)


def reference(x_eeg, x_hyp, p, alpha=ALPHA):
    pooled_eeg = jnp.mean(x_eeg, axis=1)
    pooled_hyp = jnp.mean(x_hyp, axis=1)
    out_eeg = pooled_eeg @ p["w_eeg"] + p["b_eeg"]
    out_hyp = pooled_hyp @ p["w_hyp"] + p["b_hyp"]
    gate = jax.nn.sigmoid(out_hyp) * alpha
    out_feat = out_eeg + gate * out_eeg
    output = out_feat @ p["w_out"] + p["b_out"]
    return output, jnp.concatenate([pooled_eeg, pooled_hyp], axis=1)


if __name__ == "__main__":
    B, L_EEG, L_HYP = 2, 8, 8
    EMBED_DIM, OUT_CHANS = 32, 16   # cfg.SWIN.EMBED_DIM, cfg.SWIN.OUT_CHANS

    key = jax.random.PRNGKey(0)
    k_eeg, k_hyp, k_p = jax.random.split(key, 3)
    x_eeg = jax.random.normal(k_eeg, (B, L_EEG, EMBED_DIM), jnp.float32)
    x_hyp = jax.random.normal(k_hyp, (B, L_HYP, 10), jnp.float32)
    params = init_params(k_p, EMBED_DIM, OUT_CHANS)

    out, feat = head_merging(x_eeg, x_hyp, params)
    jax.block_until_ready((out, feat))

    ref_out, ref_feat = reference(x_eeg, x_hyp, params)
    assert out.shape == ref_out.shape and feat.shape == ref_feat.shape
    assert jnp.allclose(out, ref_out, atol=1e-4, rtol=1e-5), "output mismatch"
    assert jnp.allclose(feat, ref_feat, atol=1e-5), "feature concat mismatch"

    print("KERNEL_OK")
</pallas_src>

<mosaic_0001>
module attributes {stable_mosaic.version = 11 : i64} {
  func.func @_head_merging_kernel(%arg0: i32, %arg1: i32, %arg2: memref<2x8x32xf32, #tpu.memory_space<vmem>>, %arg3: memref<2x8x10xf32, #tpu.memory_space<vmem>>, %arg4: memref<32x16xf32, #tpu.memory_space<vmem>>, %arg5: memref<1x16xf32, #tpu.memory_space<vmem>>, %arg6: memref<10x16xf32, #tpu.memory_space<vmem>>, %arg7: memref<1x16xf32, #tpu.memory_space<vmem>>, %arg8: memref<16x1xf32, #tpu.memory_space<vmem>>, %arg9: memref<1x1xf32, #tpu.memory_space<vmem>>, %arg10: memref<2x128xf32, #tpu.memory_space<vmem>>, %arg11: memref<2x32xf32, #tpu.memory_space<vmem>>) attributes {dimension_semantics = [#tpu.dimension_semantics<parallel>, #tpu.dimension_semantics<arbitrary>], iteration_bounds = array<i64: 1, 1>, scalar_prefetch = 0 : i64, scratch_operands = 1 : i64, tpu.core_type = #tpu.core_type<tc>, window_params = [{transform_indices = @transform_0, window_bounds = array<i64: 2, 8, 32>}, {transform_indices = @transform_1, window_bounds = array<i64: 2, 8, 10>}, {pipeline_mode = #tpu.pipeline_mode<synchronous>, transform_indices = @transform_2, window_bounds = array<i64: 32, 16>}, {pipeline_mode = #tpu.pipeline_mode<synchronous>, transform_indices = @transform_3, window_bounds = array<i64: 1, 16>}, {pipeline_mode = #tpu.pipeline_mode<synchronous>, transform_indices = @transform_4, window_bounds = array<i64: 10, 16>}, {pipeline_mode = #tpu.pipeline_mode<synchronous>, transform_indices = @transform_5, window_bounds = array<i64: 1, 16>}, {pipeline_mode = #tpu.pipeline_mode<synchronous>, transform_indices = @transform_6, window_bounds = array<i64: 16, 1>}, {pipeline_mode = #tpu.pipeline_mode<synchronous>, transform_indices = @transform_7, window_bounds = array<i64: 1, 1>}, {transform_indices = @transform_8, window_bounds = array<i64: 2, 128>}]} {
    %c0_i32 = arith.constant 0 : i32
    %0 = arith.cmpi eq, %arg1, %c0_i32 : i32
    %1 = arith.extui %0 : i1 to i32
    %c0_i32_0 = arith.constant 0 : i32
    %2 = arith.cmpi ne, %1, %c0_i32_0 : i32
    scf.if %2 {
      %cst_9 = arith.constant 0.000000e+00 : f32
      %11 = vector.broadcast %cst_9 : f32 to vector<2x32xf32>
      %c0_10 = arith.constant 0 : index
      %c0_11 = arith.constant 0 : index
      %12 = vector.load %arg11[%c0_10, %c0_11] : memref<2x32xf32, #tpu.memory_space<vmem>>, vector<2x32xf32>
      tpu.vector_store %arg11[%c0_10, %c0_11], %11 {strides = array<i32>} : memref<2x32xf32, #tpu.memory_space<vmem>>, vector<2x32xf32>,
    } else {
    }
    %c0 = arith.constant 0 : index
    %c0_1 = arith.constant 0 : index
    %c0_2 = arith.constant 0 : index
    %3 = vector.load %arg2[%c0, %c0_1, %c0_2] : memref<2x8x32xf32, #tpu.memory_space<vmem>>, vector<2x8x32xf32>
    %c0_3 = arith.constant 0 : index
    %c0_4 = arith.constant 0 : index
    %4 = vector.load %arg11[%c0_3, %c0_4] : memref<2x32xf32, #tpu.memory_space<vmem>>, vector<2x32xf32>
    %cst = arith.constant dense<0.000000e+00> : vector<2x32xf32>
    %5 = vector.multi_reduction <add>, %3, %cst [1] : vector<2x8x32xf32> to vector<2x32xf32>
    %6 = arith.addf %4, %5 : vector<2x32xf32>
    %c0_5 = arith.constant 0 : index
    %c0_6 = arith.constant 0 : index
    %7 = vector.load %arg11[%c0_5, %c0_6] : memref<2x32xf32, #tpu.memory_space<vmem>>, vector<2x32xf32>
    tpu.vector_store %arg11[%c0_5, %c0_6], %6 {strides = array<i32>} : memref<2x32xf32, #tpu.memory_space<vmem>>, vector<2x32xf32>,
    %c0_i32_7 = arith.constant 0 : i32
    %8 = arith.cmpi eq, %arg1, %c0_i32_7 : i32
    %9 = arith.extui %8 : i1 to i32
    %c0_i32_8 = arith.constant 0 : i32
    %10 = arith.cmpi ne, %9, %c0_i32_8 : i32
    scf.if %10 {
      %c0_9 = arith.constant 0 : index
      %c0_10 = arith.constant 0 : index
      %11 = vector.load %arg11[%c0_9, %c0_10] : memref<2x32xf32, #tpu.memory_space<vmem>>, vector<2x32xf32>
      %cst_11 = arith.constant 1.250000e-01 : f32
      %12 = vector.broadcast %cst_11 : f32 to vector<2x32xf32>
      %13 = arith.mulf %11, %12 : vector<2x32xf32>
      %c0_12 = arith.constant 0 : index
      %c0_13 = arith.constant 0 : index
      %c0_14 = arith.constant 0 : index
      %14 = vector.load %arg3[%c0_12, %c0_13, %c0_14] : memref<2x8x10xf32, #tpu.memory_space<vmem>>, vector<2x8x10xf32>
      %cst_15 = arith.constant dense<0.000000e+00> : vector<2x10xf32>
      %15 = vector.multi_reduction <add>, %14, %cst_15 [1] : vector<2x8x10xf32> to vector<2x10xf32>
      %cst_16 = arith.constant 8.000000e+00 : f32
      %16 = vector.broadcast %cst_16 : f32 to vector<2x10xf32>
      %17 = arith.divf %15, %16 : vector<2x10xf32>
      %c0_17 = arith.constant 0 : index
      %c0_18 = arith.constant 0 : index
      %18 = vector.load %arg4[%c0_17, %c0_18] : memref<32x16xf32, #tpu.memory_space<vmem>>, vector<32x16xf32>
      %cst_19 = arith.constant dense<0.000000e+00> : vector<2x16xf32>
      %19 = tpu.matmul %13, %18, %cst_19 {dimension_numbers = #tpu.dot_dimension_numbers<[1], [0], [0], [1], [0, 0, 1, 1], [], []>} : vector<2x32xf32>, vector<32x16xf32>, vector<2x16xf32> -> vector<2x16xf32>
      %c0_20 = arith.constant 0 : index
      %c0_21 = arith.constant 0 : index
      %20 = vector.load %arg5[%c0_20, %c0_21] : memref<1x16xf32, #tpu.memory_space<vmem>>, vector<1x16xf32>
      %21 = vector.broadcast %20 : vector<1x16xf32> to vector<2x16xf32>
      %22 = arith.addf %19, %21 : vector<2x16xf32>
      %c0_22 = arith.constant 0 : index
      %c0_23 = arith.constant 0 : index
      %23 = vector.load %arg6[%c0_22, %c0_23] : memref<10x16xf32, #tpu.memory_space<vmem>>, vector<10x16xf32>
      %cst_24 = arith.constant dense<0.000000e+00> : vector<2x16xf32>
      %24 = tpu.matmul %17, %23, %cst_24 {dimension_numbers = #tpu.dot_dimension_numbers<[1], [0], [0], [1], [0, 0, 1, 1], [], []>} : vector<2x10xf32>, vector<10x16xf32>, vector<2x16xf32> -> vector<2x16xf32>
      %c0_25 = arith.constant 0 : index
      %c0_26 = arith.constant 0 : index
      %25 = vector.load %arg7[%c0_25, %c0_26] : memref<1x16xf32, #tpu.memory_space<vmem>>, vector<1x16xf32>
      %26 = vector.broadcast %25 : vector<1x16xf32> to vector<2x16xf32>
      %27 = arith.addf %24, %26 : vector<2x16xf32>
      %28 = arith.negf %27 : vector<2x16xf32>
      %29 = math.exp %28 : vector<2x16xf32>
      %cst_27 = arith.constant 1.000000e+00 : f32
      %30 = vector.broadcast %cst_27 : f32 to vector<2x16xf32>
      %31 = arith.addf %30, %29 : vector<2x16xf32>
      %32 = arith.divf %30, %31 : vector<2x16xf32>
      %cst_28 = arith.constant 5.000000e-03 : f32
      %33 = vector.broadcast %cst_28 : f32 to vector<2x16xf32>
      %34 = arith.mulf %32, %33 : vector<2x16xf32>
      %cst_29 = arith.constant 1.000000e+00 : f32
      %35 = vector.broadcast %cst_29 : f32 to vector<2x16xf32>
      %36 = arith.addf %35, %34 : vector<2x16xf32>
      %37 = arith.mulf %22, %36 : vector<2x16xf32>
      %c0_30 = arith.constant 0 : index
      %c0_31 = arith.constant 0 : index
      %38 = vector.load %arg8[%c0_30, %c0_31] : memref<16x1xf32, #tpu.memory_space<vmem>>, vector<16x1xf32>
      %cst_32 = arith.constant dense<0.000000e+00> : vector<2x1xf32>
      %39 = tpu.matmul %37, %38, %cst_32 {dimension_numbers = #tpu.dot_dimension_numbers<[1], [0], [0], [1], [0, 0, 1, 1], [], []>} : vector<2x16xf32>, vector<16x1xf32>, vector<2x1xf32> -> vector<2x1xf32>
      %c0_33 = arith.constant 0 : index
      %c0_34 = arith.constant 0 : index
      %40 = vector.load %arg9[%c0_33, %c0_34] : memref<1x1xf32, #tpu.memory_space<vmem>>, vector<1x1xf32>
      %41 = vector.broadcast %40 : vector<1x1xf32> to vector<2x1xf32>
      %42 = arith.addf %39, %41 : vector<2x1xf32>
      %cst_35 = arith.constant 0.000000e+00 : f32
      %43 = vector.broadcast %cst_35 : f32 to vector<2x128xf32>
      %c0_36 = arith.constant 0 : index
      %c0_37 = arith.constant 0 : index
      %44 = vector.load %arg10[%c0_36, %c0_37] : memref<2x128xf32, #tpu.memory_space<vmem>>, vector<2x128xf32>
      tpu.vector_store %arg10[%c0_36, %c0_37], %43 {strides = array<i32>} : memref<2x128xf32, #tpu.memory_space<vmem>>, vector<2x128xf32>,
      %c0_38 = arith.constant 0 : index
      %c0_39 = arith.constant 0 : index
      %45 = vector.load %arg10[%c0_38, %c0_39] : memref<2x128xf32, #tpu.memory_space<vmem>>, vector<2x1xf32>
      tpu.vector_store %arg10[%c0_38, %c0_39], %42 {strides = array<i32>} : memref<2x128xf32, #tpu.memory_space<vmem>>, vector<2x1xf32>,
      %c0_40 = arith.constant 0 : index
      %c1 = arith.constant 1 : index
      %46 = vector.load %arg10[%c0_40, %c1] : memref<2x128xf32, #tpu.memory_space<vmem>>, vector<2x32xf32>
      tpu.vector_store %arg10[%c0_40, %c1], %13 {strides = array<i32>} : memref<2x128xf32, #tpu.memory_space<vmem>>, vector<2x32xf32>,
      %c0_41 = arith.constant 0 : index
      %c33 = arith.constant 33 : index
      %47 = vector.load %arg10[%c0_41, %c33] : memref<2x128xf32, #tpu.memory_space<vmem>>, vector<2x10xf32>
      tpu.vector_store %arg10[%c0_41, %c33], %17 {strides = array<i32>} : memref<2x128xf32, #tpu.memory_space<vmem>>, vector<2x10xf32>,
    } else {
    }
    return
  }
  func.func @transform_0(%arg0: i32, %arg1: i32) -> (i32, i32, i32) {
    %c0_i32 = arith.constant 0 : i32
    %c0_i32_0 = arith.constant 0 : i32
    return %arg0, %arg1, %c0_i32 : i32, i32, i32
  }
  func.func @transform_1(%arg0: i32, %arg1: i32) -> (i32, i32, i32) {
    %c0_i32 = arith.constant 0 : i32
    %c0_i32_0 = arith.constant 0 : i32
    %c0_i32_1 = arith.constant 0 : i32
    return %arg0, %c0_i32, %c0_i32_0 : i32, i32, i32
  }
  func.func @transform_2(%arg0: i32, %arg1: i32) -> (i32, i32) {
    %c0_i32 = arith.constant 0 : i32
    %c0_i32_0 = arith.constant 0 : i32
    %c0_i32_1 = arith.constant 0 : i32
    return %c0_i32, %c0_i32_0 : i32, i32
  }
  func.func @transform_3(%arg0: i32, %arg1: i32) -> (i32, i32) {
    %c0_i32 = arith.constant 0 : i32
    %c0_i32_0 = arith.constant 0 : i32
    %c0_i32_1 = arith.constant 0 : i32
    return %c0_i32, %c0_i32_0 : i32, i32
  }
  func.func @transform_4(%arg0: i32, %arg1: i32) -> (i32, i32) {
    %c0_i32 = arith.constant 0 : i32
    %c0_i32_0 = arith.constant 0 : i32
    %c0_i32_1 = arith.constant 0 : i32
    return %c0_i32, %c0_i32_0 : i32, i32
  }
  func.func @transform_5(%arg0: i32, %arg1: i32) -> (i32, i32) {
    %c0_i32 = arith.constant 0 : i32
    %c0_i32_0 = arith.constant 0 : i32
    %c0_i32_1 = arith.constant 0 : i32
    return %c0_i32, %c0_i32_0 : i32, i32
  }
  func.func @transform_6(%arg0: i32, %arg1: i32) -> (i32, i32) {
    %c0_i32 = arith.constant 0 : i32
    %c0_i32_0 = arith.constant 0 : i32
    %c0_i32_1 = arith.constant 0 : i32
    return %c0_i32, %c0_i32_0 : i32, i32
  }
  func.func @transform_7(%arg0: i32, %arg1: i32) -> (i32, i32) {
    %c0_i32 = arith.constant 0 : i32
    %c0_i32_0 = arith.constant 0 : i32
    %c0_i32_1 = arith.constant 0 : i32
    return %c0_i32, %c0_i32_0 : i32, i32
  }
  func.func @transform_8(%arg0: i32, %arg1: i32) -> (i32, i32) {
    %c0_i32 = arith.constant 0 : i32
    %c0_i32_0 = arith.constant 0 : i32
    return %arg0, %c0_i32 : i32, i32
  }
}

</mosaic_0001>

<llo_original>
// kernel: tpu_custom_call.1
$region0: #{tpu_custom_call.1}
  #allocation0 [shape = 'u32[]', space=smem, size = 0x4, offset = 0x4, fixed_abs, tag = 'smem constant byte address 0x4 - core index']
  #allocation1 [shape = 'u32[144,128]{1,0:T(1,128)}', space=vmem, size = 0x12000, scoped, tag = 'internal scratch']
  #allocation2 [shape = 'f32[2,32]{1,0:T(2,128)}', space=vmem, size = 0x400, scoped, tag = 'scratch operand']
  #allocation3 [shape = 'f32[1,1]{1,0:T(1,128)S(1)}', space=vmem, size = 0x200, scoped, tag = 'scoped memory for tpu_custom_call.1']
  %s0 = inlined_call_operand.vmem [shape: f32[2,8,32], index: 0, kind: input, shape index: {}]
  %s1 = inlined_call_operand.vmem [shape: f32[2,8,10], index: 1, kind: input, shape index: {}]
  %s2 = inlined_call_operand.vmem [shape: f32[32,16], index: 2, kind: input, shape index: {}]
  %s3 = inlined_call_operand.vmem [shape: f32[1,16], index: 3, kind: input, shape index: {}]
  %s4 = inlined_call_operand.vmem [shape: f32[10,16], index: 4, kind: input, shape index: {}]
  %s5 = inlined_call_operand.vmem [shape: f32[1,16], index: 5, kind: input, shape index: {}]
  %s6 = inlined_call_operand.vmem [shape: f32[16,1], index: 6, kind: input, shape index: {}]
  %s7 = inlined_call_operand.<no memory space> [shape: f32[1,1], index: 7, kind: input, shape index: {}]
  %s8 = inlined_call_operand.hbm [shape: f32[2,128], index: 8, kind: output, shape index: {}]
  %s9 = sld [smem:[#allocation0]]
  $region50: #{tpu_custom_call.1} parent=0
    _
  %s11 = ssub.s32 1, %s9
  %s12 = scalar_select 0, %s11, %s9
  %v13 = vstv %s7
  %14 = vst [vmem:[#allocation3] sm:$0x1] %v13
  $region1: #{tpu_custom_call.1} parent=0
    #allocation4 [shape = 'u8[1024]{0}', space=vmem, size = 0x400, scoped, tag = 'output window, operand 0, single buffered']
    #allocation5 [shape = 's32[1]{0}', space=sflag, size = 0x4, scoped, tag = 'scoped memory for tpu_custom_call.1']
    %15 = vsyncpa [#allocation5], 0
    // Predicated region
    $region2: #{tpu_custom_call.1} parent=1 // pred_check
      _
    $region3: #{tpu_custom_call.1} parent=1 // pred_check_branch
      %17 = sbr.rel (0) target = $region5
    $region4: #{tpu_custom_call.1} parent=1 // pred_region
      _
    $region5: #{tpu_custom_call.1} parent=1 // pred_fallthru
      _
    // Predicated region
    $region6: #{tpu_custom_call.1} parent=1 // pred_check
      _
    $region7: #{tpu_custom_call.1} parent=1 // pred_check_branch
      %19 = sbr.rel (0) target = $region9
    $region8: #{tpu_custom_call.1} parent=1 // pred_region
      _
    $region9: #{tpu_custom_call.1} parent=1 // pred_fallthru
      _
    // Predicated region
    $region10: #{tpu_custom_call.1} parent=1 // pred_check
      _
    $region11: #{tpu_custom_call.1} parent=1 // pred_check_branch
      %21 = sbr.rel (0) target = $region13
    $region12: #{tpu_custom_call.1} parent=1 // pred_region
      _
    $region13: #{tpu_custom_call.1} parent=1 // pred_fallthru
      _
    // Predicated region
    $region14: #{tpu_custom_call.1} parent=1 // pred_check
      _
    $region15: #{tpu_custom_call.1} parent=1 // pred_check_branch
      %23 = sbr.rel (0) target = $region17
    $region16: #{tpu_custom_call.1} parent=1 // pred_region
      _
    $region17: #{tpu_custom_call.1} parent=1 // pred_fallthru
      _
    // Predicated region
    $region18: #{tpu_custom_call.1} parent=1 // pred_check
      _
    $region19: #{tpu_custom_call.1} parent=1 // pred_check_branch
      %25 = sbr.rel (0) target = $region21
    $region20: #{tpu_custom_call.1} parent=1 // pred_region
      _
    $region21: #{tpu_custom_call.1} parent=1 // pred_fallthru
      _
    // Predicated region
    $region22: #{tpu_custom_call.1} parent=1 // pred_check
      _
    $region23: #{tpu_custom_call.1} parent=1 // pred_check_branch
      %27 = sbr.rel (0) target = $region25
    $region24: #{tpu_custom_call.1} parent=1 // pred_region
      _
    $region25: #{tpu_custom_call.1} parent=1 // pred_fallthru
      _
    // Predicated region
    $region26: #{tpu_custom_call.1} parent=1 // pred_check
      _
    $region27: #{tpu_custom_call.1} parent=1 // pred_check_branch
      %29 = sbr.rel (0) target = $region29
    $region28: #{tpu_custom_call.1} parent=1 // pred_region
      _
    $region29: #{tpu_custom_call.1} parent=1 // pred_fallthru
      _
    // Predicated region
    $region30: #{tpu_custom_call.1} parent=1 // pred_check
      _
    $region31: #{tpu_custom_call.1} parent=1 // pred_check_branch
      %31 = sbr.rel (0) target = $region33
    $region32: #{tpu_custom_call.1} parent=1 // pred_region
      _
    $region33: #{tpu_custom_call.1} parent=1 // pred_fallthru
      _
    %p32 = scmp.eq.s32.totalorder 0, 0
    // Predicated region
    $region34: #{tpu_custom_call.1} parent=1 // pred_check
      %p33 = pneg %p32
    $region35: #{tpu_custom_call.1} parent=1 // pred_check_branch
      %35 = sbr.rel (%p33) target = $region37
    $region36: #{tpu_custom_call.1} parent=1 // pred_region
      %vm36 = vcmask 254976
      %37 = vst.msk [vmem:[#allocation2] sm:$0x3] %vm36, 0.0
    $region37: #{tpu_custom_call.1} parent=1 // pred_fallthru
      _
    %v38 = vld [vmem:[%s0] sm:$0xff]
    %v39 = vld [vmem:[%s0 + $0x8] sm:$0xff]
    %v40 = vld [vmem:[#allocation2] sm:$0x3]
    %vm41 = vcmask 261120
    %v42 = vsel %vm41, %v38, 0.0
    %v43 = vrot.slane %v42, 4
    %v44 = vadd.f32 %v42, %v43
    %v45 = vrot.slane %v44, 2
    %v46 = vadd.f32 %v44, %v45
    %v47 = vrot.slane %v46, 1
    %v48 = vadd.f32 %v46, %v47
    %v49 = vsel %vm41, %v39, 0.0
    %v50 = vrot.slane %v49, 4
    %v51 = vadd.f32 %v49, %v50
    %v52 = vrot.slane %v51, 2
    %v53 = vadd.f32 %v51, %v52
    %v54 = vrot.slane %v53, 1
    %v55 = vadd.f32 %v53, %v54
    %vm58 = vcmask 1041409
    %v59 = vsel %vm58, %v55, %v48
    %v61 = vadd.f32 %v40, %v59
    %vm62 = vcmask 254976
    %63 = vst.msk [vmem:[#allocation2] sm:$0x3] %vm62, %v61
    // Predicated region
    $region38: #{tpu_custom_call.1} parent=1 // pred_check
      %p64 = pneg %p32
    $region39: #{tpu_custom_call.1} parent=1 // pred_check_branch
      %66 = sbr.rel (%p64) target = $region41
    $region40: #{tpu_custom_call.1} parent=1 // pred_region
      %v67 = vld [vmem:[#allocation2] sm:$0x3]
      %v68 = vmul.f32 %v67, 0.125
      %v69 = vld [vmem:[%s1] sm:$0xff]
      %v70 = vld [vmem:[%s1 + $0x8] sm:$0xff]
      %vm71 = vcmask 80896
      %v72 = vsel %vm71, %v69, 0.0
      %v73 = vrot.slane %v72, 4
      %v74 = vadd.f32 %v72, %v73
      %v75 = vrot.slane %v74, 2
      %v76 = vadd.f32 %v74, %v75
      %v77 = vrot.slane %v76, 1
      %v78 = vadd.f32 %v76, %v77
      %v79 = vsel %vm71, %v70, 0.0
      %v80 = vrot.slane %v79, 4
      %v81 = vadd.f32 %v79, %v80
      %v82 = vrot.slane %v81, 2
      %v83 = vadd.f32 %v81, %v82
      %v84 = vrot.slane %v83, 1
      %v85 = vadd.f32 %v83, %v84
      %v86 = vrcp.pop 8.0
      %v87 = vmul.f32 %v78, %v86
      %v88 = vmul.f32 %v85, %v86
      %v89 = vld [vmem:[%s2] sm:$0xff]
      %v90 = vld [vmem:[%s2 + $0x8] sm:$0xff]
      %v91 = vld [vmem:[%s2 + $0x10] sm:$0xff]
      %v92 = vld [vmem:[%s2 + $0x18] sm:$0xff]
      %v93 = vld [vmem:[%s3] sm:$0x1]
      %v95 = vlaneseq
      %v96 = vshrl.u32 %v95, 7
      %v97 = vsub.s32 0, %v96
      %v98 = vrot.slane %v93, %v97
      %v101 = vsel %vm41, %v68, 0
      %103 = vmatprep.subr.mxu0 0.0
      %104 = vmatpush1.msra.mxu0 %v89
      %105 = vmatprep.subr.mxu0 0.0
      %106 = vmatpush1.msra.mxu0 %v90
      %107 = vmatprep.subr.mxu0 0.0
      %108 = vmatpush1.msra.mxu0 %v91
      %109 = vmatprep.subr.mxu0 0.0
      %110 = vmatpush1.msra.mxu0 %v92
      %111 = vmatprep.subr.mxu0 0.0
      %112 = vmatpush1.msra.mxu0 0.0
      %113 = vmatprep.subr.mxu0 0.0
      %114 = vmatpush1.msra.mxu0 0.0
      %115 = vmatprep.subr.mxu0 0.0
      %116 = vmatpush1.msra.mxu0 0.0
      %117 = vmatprep.subr.mxu0 0.0
      %118 = vmatpush1.msra.mxu0 0.0
      %119 = vmatprep.subr.mxu0 0.0
      %120 = vmatpush1.msra.mxu0 0.0
      %121 = vmatprep.subr.mxu0 0.0
      %122 = vmatpush1.msra.mxu0 0.0
      %123 = vmatprep.subr.mxu0 0.0
      %124 = vmatpush1.msra.mxu0 0.0
      %125 = vmatprep.subr.mxu0 0.0
      %126 = vmatpush1.msra.mxu0 0.0
      %127 = vmatprep.subr.mxu0 0.0
      %128 = vmatpush1.msra.mxu0 0.0
      %129 = vmatprep.subr.mxu0 0.0
      %130 = vmatpush1.msra.mxu0 0.0
      %131 = vmatprep.subr.mxu0 0.0
      %132 = vmatpush1.msra.mxu0 0.0
      %133 = vmatprep.subr.mxu0 0.0
      %134 = vmatpush1.msra.mxu0 0.0
      %135 = vmatprep.subr.mxu0 0.0
      %136 = vmatpush1.msra.mxu0 0.0
      %137 = vmatprep.subr.mxu0 0.0
      %138 = vmatpush1.msra.mxu0 0.0
      %139 = vmatprep.subr.mxu0 0.0
      %140 = vmatpush1.msra.mxu0 0.0
      %141 = vmatprep.subr.mxu0 0.0
      %142 = vmatpush1.msra.mxu0 0.0
      %143 = vmatprep.subr.mxu0 0.0
      %144 = vmatpush1.msra.mxu0 0.0
      %145 = vmatprep.subr.mxu0 0.0
      %146 = vmatpush1.msra.mxu0 0.0
      %147 = vmatprep.subr.mxu0 0.0
      %148 = vmatpush1.msra.mxu0 0.0
      %149 = vmatprep.subr.mxu0 0.0
      %150 = vmatpush1.msra.mxu0 0.0
      %151 = vmatprep.subr.mxu0 0.0
      %152 = vmatpush1.msra.mxu0 0.0
      %153 = vmatprep.subr.mxu0 0.0
      %154 = vmatpush1.msra.mxu0 0.0
      %155 = vmatprep.subr.mxu0 0.0
      %156 = vmatpush1.msra.mxu0 0.0
      %157 = vmatprep.subr.mxu0 0.0
      %158 = vmatpush1.msra.mxu0 0.0
      %159 = vmatprep.subr.mxu0 0.0
      %160 = vmatpush1.msra.mxu0 0.0
      %161 = vmatprep.subr.mxu0 0.0
      %162 = vmatpush1.msra.mxu0 0.0
      %163 = vmatprep.subr.mxu0 0.0
      %164 = vmatpush1.msra.mxu0 0.0
      %165 = vmatprep.subr.mxu0 0.0
      %166 = vmatpush1.msra.mxu0 0.0
      %167 = vmatprep.mubr.f32.mxu0 0.0
      %168 = vmatmul.mubr.f32.gmra.mrb[0].mxu0 %v101
      %v169 = vpop.f32.mrb[0].mxu0
      %v170 = vadd.f32 %v98, %v169
      %v171 = vpop.f32.mrb[0].mxu0
      %172 = vdwg.mxu0
      %v173 = vld [vmem:[%s4] sm:$0xff]
      %v174 = vld [vmem:[%s4 + $0x8] sm:$0x3]
      %v175 = vld [vmem:[%s5] sm:$0x1]
      %v177 = vlaneseq
      %v178 = vshrl.u32 %v177, 7
      %v179 = vsub.s32 0, %v178
      %v180 = vrot.slane %v175, %v179
      %v184 = vsel %vm58, %v88, %v87
      %v185 = vsel %vm71, %v184, 0
      %vm187 = vcmask 1041408
      %v189 = vsel %vm187, %v174, 0
      %191 = vmatprep.subr.mxu0 0.0
      %192 = vmatpush1.msra.mxu0 %v173
      %193 = vmatprep.subr.mxu0 0.0
      %194 = vmatpush1.msra.mxu0 %v189
      %195 = vmatprep.subr.mxu0 0.0
      %196 = vmatpush1.msra.mxu0 0.0
      %197 = vmatprep.subr.mxu0 0.0
      %198 = vmatpush1.msra.mxu0 0.0
      %199 = vmatprep.subr.mxu0 0.0
      %200 = vmatpush1.msra.mxu0 0.0
      %201 = vmatprep.subr.mxu0 0.0
      %202 = vmatpush1.msra.mxu0 0.0
      %203 = vmatprep.subr.mxu0 0.0
      %204 = vmatpush1.msra.mxu0 0.0
      %205 = vmatprep.subr.mxu0 0.0
      %206 = vmatpush1.msra.mxu0 0.0
      %207 = vmatprep.subr.mxu0 0.0
      %208 = vmatpush1.msra.mxu0 0.0
      %209 = vmatprep.subr.mxu0 0.0
      %210 = vmatpush1.msra.mxu0 0.0
      %211 = vmatprep.subr.mxu0 0.0
      %212 = vmatpush1.msra.mxu0 0.0
      %213 = vmatprep.subr.mxu0 0.0
      %214 = vmatpush1.msra.mxu0 0.0
      %215 = vmatprep.subr.mxu0 0.0
      %216 = vmatpush1.msra.mxu0 0.0
      %217 = vmatprep.subr.mxu0 0.0
      %218 = vmatpush1.msra.mxu0 0.0
      %219 = vmatprep.subr.mxu0 0.0
      %220 = vmatpush1.msra.mxu0 0.0
      %221 = vmatprep.subr.mxu0 0.0
      %222 = vmatpush1.msra.mxu0 0.0
      %223 = vmatprep.subr.mxu0 0.0
      %224 = vmatpush1.msra.mxu0 0.0
      %225 = vmatprep.subr.mxu0 0.0
      %226 = vmatpush1.msra.mxu0 0.0
      %227 = vmatprep.subr.mxu0 0.0
      %228 = vmatpush1.msra.mxu0 0.0
      %229 = vmatprep.subr.mxu0 0.0
      %230 = vmatpush1.msra.mxu0 0.0
      %231 = vmatprep.subr.mxu0 0.0
      %232 = vmatpush1.msra.mxu0 0.0
      %233 = vmatprep.subr.mxu0 0.0
      %234 = vmatpush1.msra.mxu0 0.0
      %235 = vmatprep.subr.mxu0 0.0
      %236 = vmatpush1.msra.mxu0 0.0
      %237 = vmatprep.subr.mxu0 0.0
      %238 = vmatpush1.msra.mxu0 0.0
      %239 = vmatprep.subr.mxu0 0.0
      %240 = vmatpush1.msra.mxu0 0.0
      %241 = vmatprep.subr.mxu0 0.0
      %242 = vmatpush1.msra.mxu0 0.0
      %243 = vmatprep.subr.mxu0 0.0
      %244 = vmatpush1.msra.mxu0 0.0
      %245 = vmatprep.subr.mxu0 0.0
      %246 = vmatpush1.msra.mxu0 0.0
      %247 = vmatprep.subr.mxu0 0.0
      %248 = vmatpush1.msra.mxu0 0.0
      %249 = vmatprep.subr.mxu0 0.0
      %250 = vmatpush1.msra.mxu0 0.0
      %251 = vmatprep.subr.mxu0 0.0
      %252 = vmatpush1.msra.mxu0 0.0
      %253 = vmatprep.subr.mxu0 0.0
      %254 = vmatpush1.msra.mxu0 0.0
      %255 = vmatprep.mubr.f32.mxu0 0.0
      %256 = vmatmul.mubr.f32.gmra.mrb[0].mxu0 %v185
      %v257 = vpop.f32.mrb[0].mxu0
      %v258 = vadd.f32 %v180, %v257
      %v259 = vpop.f32.mrb[0].mxu0
      %260 = vdwg.mxu0
      %v261 = vxor.u32 %v258, 2147483648
      %v262 = vmul.f32 %v261, 1.442695
      %v263 = vpow.pop %v262
      %v264 = vadd.f32 %v263, 1.0
      %v265 = vrcp.pop %v264
      %v266 = vmul.f32 1.0, %v265
      %v267 = vmul.f32 %v266, 0.005
      %v268 = vadd.f32 %v267, 1.0
      %v269 = vmul.f32 %v170, %v268
      %v270 = vld [vmem:[%s6] sm:$0xff]
      %v271 = vld [vmem:[%s6 + $0x8] sm:$0xff]
      %v272 = vld [vmem:[#allocation3] sm:$0x1]
      %v274 = vlaneseq
      %v275 = vshrl.u32 %v274, 7
      %v276 = vsub.s32 0, %v275
      %v277 = vrot.slane %v272, %v276
      %vm279 = vcmask 130048
      %v281 = vsel %vm279, %v269, 0
      %283 = vmatprep.subr.mxu0 0.0
      %284 = vmatpush1.msra.mxu0 %v270
      %285 = vmatprep.subr.mxu0 0.0
      %286 = vmatpush1.msra.mxu0 %v271
      %287 = vmatprep.subr.mxu0 0.0
      %288 = vmatpush1.msra.mxu0 0.0
      %289 = vmatprep.subr.mxu0 0.0
      %290 = vmatpush1.msra.mxu0 0.0
      %291 = vmatprep.subr.mxu0 0.0
      %292 = vmatpush1.msra.mxu0 0.0
      %293 = vmatprep.subr.mxu0 0.0
      %294 = vmatpush1.msra.mxu0 0.0
      %295 = vmatprep.subr.mxu0 0.0
      %296 = vmatpush1.msra.mxu0 0.0
      %297 = vmatprep.subr.mxu0 0.0
      %298 = vmatpush1.msra.mxu0 0.0
      %299 = vmatprep.subr.mxu0 0.0
      %300 = vmatpush1.msra.mxu0 0.0
      %301 = vmatprep.subr.mxu0 0.0
      %302 = vmatpush1.msra.mxu0 0.0
      %303 = vmatprep.subr.mxu0 0.0
      %304 = vmatpush1.msra.mxu0 0.0
      %305 = vmatprep.subr.mxu0 0.0
      %306 = vmatpush1.msra.mxu0 0.0
      %307 = vmatprep.subr.mxu0 0.0
      %308 = vmatpush1.msra.mxu0 0.0
      %309 = vmatprep.subr.mxu0 0.0
      %310 = vmatpush1.msra.mxu0 0.0
      %311 = vmatprep.subr.mxu0 0.0
      %312 = vmatpush1.msra.mxu0 0.0
      %313 = vmatprep.subr.mxu0 0.0
      %314 = vmatpush1.msra.mxu0 0.0
      %315 = vmatprep.subr.mxu0 0.0
      %316 = vmatpush1.msra.mxu0 0.0
      %317 = vmatprep.subr.mxu0 0.0
      %318 = vmatpush1.msra.mxu0 0.0
      %319 = vmatprep.subr.mxu0 0.0
      %320 = vmatpush1.msra.mxu0 0.0
      %321 = vmatprep.subr.mxu0 0.0
      %322 = vmatpush1.msra.mxu0 0.0
      %323 = vmatprep.subr.mxu0 0.0
      %324 = vmatpush1.msra.mxu0 0.0
      %325 = vmatprep.subr.mxu0 0.0
      %326 = vmatpush1.msra.mxu0 0.0
      %327 = vmatprep.subr.mxu0 0.0
      %328 = vmatpush1.msra.mxu0 0.0
      %329 = vmatprep.subr.mxu0 0.0
      %330 = vmatpush1.msra.mxu0 0.0
      %331 = vmatprep.subr.mxu0 0.0
      %332 = vmatpush1.msra.mxu0 0.0
      %333 = vmatprep.subr.mxu0 0.0
      %334 = vmatpush1.msra.mxu0 0.0
      %335 = vmatprep.subr.mxu0 0.0
      %336 = vmatpush1.msra.mxu0 0.0
      %337 = vmatprep.subr.mxu0 0.0
      %338 = vmatpush1.msra.mxu0 0.0
      %339 = vmatprep.subr.mxu0 0.0
      %340 = vmatpush1.msra.mxu0 0.0
      %341 = vmatprep.subr.mxu0 0.0
      %342 = vmatpush1.msra.mxu0 0.0
      %343 = vmatprep.subr.mxu0 0.0
      %344 = vmatpush1.msra.mxu0 0.0
      %345 = vmatprep.subr.mxu0 0.0
      %346 = vmatpush1.msra.mxu0 0.0
      %347 = vmatprep.mubr.f32.mxu0 0.0
      %348 = vmatmul.mubr.f32.gmra.mrb[0].mxu0 %v281
      %v349 = vpop.f32.mrb[0].mxu0
      %v350 = vadd.f32 %v277, %v349
      %v351 = vpop.f32.mrb[0].mxu0
      %352 = vdwg.mxu0
      %353 = vst [vmem:[#allocation4] sm:$0x3] 0.0
      %vm354 = vcmask 1024
      %355 = vst.msk [vmem:[#allocation4] sm:$0x3] %vm354, %v350
      %356 = vrot.lane.b32.xlu0 %v68, 1
      %v357 = vpop.permute.xlu0 %356
      %vm359 = vcmask 263176
      %360 = vst.msk [vmem:[#allocation4] sm:$0x3] %vm359, %v357
      %361 = vrot.lane.b32.xlu0 %v184, 33
      %v362 = vpop.permute.xlu0 %361
      %vm364 = vcmask 345352
      %365 = vst.msk [vmem:[#allocation4] sm:$0x3] %vm364, %v362
    $region41: #{tpu_custom_call.1} parent=1 // pred_fallthru
      _
    // Predicated region
    $region42: #{tpu_custom_call.1} parent=1 // pred_check
      _
    $region43: #{tpu_custom_call.1} parent=1 // pred_check_branch
      %367 = sbr.rel (0) target = $region45
    $region44: #{tpu_custom_call.1} parent=1 // pred_region
      %s369 = ssub.s32 32, 32
      %370 = vsyncadd [#allocation5], %s369
      %s372 = sshll.u32 [#allocation4], 4
      %s373 = int_to_ptr.vmem [resolvable:$true] %s372
      %375 = dma.vmem_to_hbm [thread:$0]  %s373, 32, %s8, [#allocation5]
    $region45: #{tpu_custom_call.1} parent=1 // pred_fallthru
      _
    // Predicated region
    $region46: #{tpu_custom_call.1} parent=1 // pred_check
      _
    $region47: #{tpu_custom_call.1} parent=1 // pred_check_branch
      %377 = sbr.rel (0) target = $region49
    $region48: #{tpu_custom_call.1} parent=1 // pred_region
      %378 = dma.done [#allocation5], 32
    $region49: #{tpu_custom_call.1} parent=1 // pred_fallthru
      _
    %379 = vsyncpa [#allocation5], 1

</llo_original>
